<compile_context>
chip_gen: v7x
topology: tpu7x:2x2x1
jax: 0.10.0
libtpu: 0.0.40
codegen_flags: <defaults>
</compile_context>

<pallas_src>
import jax
import jax.numpy as jnp
from jax.experimental import pallas as pl
from jax.experimental.pallas import tpu as pltpu


def _exp_scaling_kernel(emb_ref, exp_ref, out_ref):
    # emb_ref: (TM, TN), exp_ref: (TM, 1) -> broadcasted multiply on the VPU.
    out_ref[...] = (emb_ref[...] * exp_ref[...]).astype(out_ref.dtype)


def exp_scaling(emb: jax.Array, exp: jax.Array, *, tm_target: int = 512,
                tn_target: int = 512) -> jax.Array:
    """emb: [..., H], exp: [...]  ->  [..., H]  (emb * exp[..., None])."""
    assert emb.ndim >= 2 and exp.shape == emb.shape[:-1], (emb.shape, exp.shape)
    lead = emb.shape[:-1]
    H = emb.shape[-1]
    R = 1
    for d in lead:
        R *= int(d)

    emb2 = emb.reshape(R, H)
    exp2 = exp.reshape(R, 1)  # keep original dtype; promote inside the kernel

    out_dtype = jnp.result_type(emb.dtype, exp.dtype)

    # Tile selection: use the full extent when small (satisfies the
    # "equal full array dims" clause of the (8,128) rule); otherwise use
    # roofline-sized, (8,128)-aligned tiles. Ragged last tiles are masked.
    tm = R if R <= tm_target else tm_target
    tn = H if H <= tn_target else tn_target

    grid = (pl.cdiv(R, tm), pl.cdiv(H, tn))

    in_bytes = R * H * emb2.dtype.itemsize + R * exp2.dtype.itemsize
    out_bytes = R * H * jnp.dtype(out_dtype).itemsize
    cost = pl.CostEstimate(
        flops=R * H,
        transcendentals=0,
        bytes_accessed=in_bytes + out_bytes,
    )

    out2 = pl.pallas_call(
        _exp_scaling_kernel,
        out_shape=jax.ShapeDtypeStruct((R, H), out_dtype),
        grid_spec=pltpu.PrefetchScalarGridSpec(
            num_scalar_prefetch=0,
            grid=grid,
            in_specs=[
                pl.BlockSpec((tm, tn), lambda i, j: (i, j)),
                # exp tile ignores the H grid axis: fetched once per row tile.
                pl.BlockSpec((tm, 1), lambda i, j: (i, 0)),
            ],
            out_specs=pl.BlockSpec((tm, tn), lambda i, j: (i, j)),
        ),
        compiler_params=pltpu.CompilerParams(
            dimension_semantics=("parallel", "parallel"),
        ),
        cost_estimate=cost,
    )(emb2, exp2)

    return out2.reshape(*lead, H)


if __name__ == "__main__":
    key = jax.random.PRNGKey(0)
    k_emb, k_exp = jax.random.split(key)

    B, S, H = 2, 8, 32
    emb = jax.random.normal(k_emb, (B, S, H), dtype=jnp.float32)
    exp = jax.random.normal(k_exp, (B, S), dtype=jnp.float32)

    out = exp_scaling(emb, exp)
    out = jax.block_until_ready(out)

    # Reference check (plain JAX) for correctness.
    ref = emb * exp[..., None]
    assert out.shape == ref.shape
    assert out.dtype == ref.dtype
    assert jnp.allclose(out, ref, atol=1e-6, rtol=1e-6)

    print("KERNEL_OK")
</pallas_src>

<mosaic_0001>
module attributes {stable_mosaic.version = 11 : i64} {
  func.func @_exp_scaling_kernel(%arg0: i32, %arg1: i32, %arg2: memref<16x32xf32, #tpu.memory_space<vmem>>, %arg3: memref<16x1xf32, #tpu.memory_space<vmem>>, %arg4: memref<16x32xf32, #tpu.memory_space<vmem>>) attributes {dimension_semantics = [#tpu.dimension_semantics<parallel>, #tpu.dimension_semantics<parallel>], iteration_bounds = array<i64: 1, 1>, scalar_prefetch = 0 : i64, scratch_operands = 0 : i64, tpu.core_type = #tpu.core_type<tc>, window_params = [{transform_indices = @transform_0, window_bounds = array<i64: 16, 32>}, {transform_indices = @transform_1, window_bounds = array<i64: 16, 1>}, {transform_indices = @transform_2, window_bounds = array<i64: 16, 32>}]} {
    %c0 = arith.constant 0 : index
    %c0_0 = arith.constant 0 : index
    %0 = vector.load %arg2[%c0, %c0_0] : memref<16x32xf32, #tpu.memory_space<vmem>>, vector<16x32xf32>
    %c0_1 = arith.constant 0 : index
    %c0_2 = arith.constant 0 : index
    %1 = vector.load %arg3[%c0_1, %c0_2] : memref<16x1xf32, #tpu.memory_space<vmem>>, vector<16x1xf32>
    %2 = vector.broadcast %1 : vector<16x1xf32> to vector<16x32xf32>
    %3 = arith.mulf %0, %2 : vector<16x32xf32>
    %c0_3 = arith.constant 0 : index
    %c0_4 = arith.constant 0 : index
    %4 = vector.load %arg4[%c0_3, %c0_4] : memref<16x32xf32, #tpu.memory_space<vmem>>, vector<16x32xf32>
    tpu.vector_store %arg4[%c0_3, %c0_4], %3 {strides = array<i32>} : memref<16x32xf32, #tpu.memory_space<vmem>>, vector<16x32xf32>,
    return
  }
  func.func @transform_0(%arg0: i32, %arg1: i32) -> (i32, i32) {
    %c0_i32 = arith.constant 0 : i32
    return %arg0, %arg1 : i32, i32
  }
  func.func @transform_1(%arg0: i32, %arg1: i32) -> (i32, i32) {
    %c0_i32 = arith.constant 0 : i32
    %c0_i32_0 = arith.constant 0 : i32
    return %arg0, %c0_i32 : i32, i32
  }
  func.func @transform_2(%arg0: i32, %arg1: i32) -> (i32, i32) {
    %c0_i32 = arith.constant 0 : i32
    return %arg0, %arg1 : i32, i32
  }
}

</mosaic_0001>

<llo_original>
// kernel: tpu_custom_call.1
$region0: #{tpu_custom_call.1}
  #allocation0 [shape = 'u32[]', space=smem, size = 0x4, offset = 0x4, fixed_abs, tag = 'smem constant byte address 0x4 - core index']
  #allocation1 [shape = 'u32[144,128]{1,0:T(1,128)}', space=vmem, size = 0x12000, scoped, tag = 'internal scratch']
  %s0 = inlined_call_operand.vmem [shape: f32[16,32], index: 0, kind: input, shape index: {}]
  %s1 = inlined_call_operand.vmem [shape: f32[16,1], index: 1, kind: input, shape index: {}]
  %s2 = inlined_call_operand.hbm [shape: f32[16,32], index: 2, kind: output, shape index: {}]
  %s3 = sld [smem:[#allocation0]]
  $region18: #{tpu_custom_call.1} parent=0
    _
  %s5 = ssub.s32 1, %s3
  %s6 = scalar_select 0, %s5, %s3
  $region1: #{tpu_custom_call.1} parent=0
    #allocation2 [shape = 'u8[8192]{0}', space=vmem, size = 0x2000, scoped, tag = 'output window, operand 0, single buffered']
    #allocation3 [shape = 's32[1]{0}', space=sflag, size = 0x4, scoped, tag = 'scoped memory for tpu_custom_call.1']
    %7 = vsyncpa [#allocation3], 0
    // Predicated region
    $region2: #{tpu_custom_call.1} parent=1 // pred_check
      _
    $region3: #{tpu_custom_call.1} parent=1 // pred_check_branch
      %9 = sbr.rel (0) target = $region5
    $region4: #{tpu_custom_call.1} parent=1 // pred_region
      _
    $region5: #{tpu_custom_call.1} parent=1 // pred_fallthru
      _
    // Predicated region
    $region6: #{tpu_custom_call.1} parent=1 // pred_check
      _
    $region7: #{tpu_custom_call.1} parent=1 // pred_check_branch
      %11 = sbr.rel (0) target = $region9
    $region8: #{tpu_custom_call.1} parent=1 // pred_region
      _
    $region9: #{tpu_custom_call.1} parent=1 // pred_fallthru
      _
    %v12 = vld [vmem:[%s0] sm:$0xff]
    %v13 = vld [vmem:[%s0 + $0x8] sm:$0xff]
    %v14 = vld [vmem:[%s1] sm:$0xff]
    %v15 = vld [vmem:[%s1 + $0x8] sm:$0xff]
    %17 = vset.pattern.permute.xlu0 0
    %18 = vperm.xlu0 %17, %v14
    %v19 = vpop.permute.xlu0 %18
    %22 = vset.pattern.permute.xlu0 0
    %23 = vperm.xlu0 %22, %v15
    %v24 = vpop.permute.xlu0 %23
    %v26 = vmul.f32 %v12, %v19
    %v27 = vmul.f32 %v13, %v24
    %vm28 = vcmask 261120
    %29 = vst.msk [vmem:[#allocation2] sm:$0xff] %vm28, %v26
    %30 = vst.msk [vmem:[#allocation2 + $0x8] sm:$0xff] %vm28, %v27
    // Predicated region
    $region10: #{tpu_custom_call.1} parent=1 // pred_check
      _
    $region11: #{tpu_custom_call.1} parent=1 // pred_check_branch
      %32 = sbr.rel (0) target = $region13
    $region12: #{tpu_custom_call.1} parent=1 // pred_region
      %s34 = ssub.s32 256, 256
      %35 = vsyncadd [#allocation3], %s34
      %s36 = sshll.u32 [#allocation2], 4
      %s37 = int_to_ptr.vmem [resolvable:$true] %s36
      %42 = dma.vmem_to_hbm [thread:$0]  %s37, 256, %s2, [#allocation3], 128, 128, 8
    $region13: #{tpu_custom_call.1} parent=1 // pred_fallthru
      _
    // Predicated region
    $region14: #{tpu_custom_call.1} parent=1 // pred_check
      _
    $region15: #{tpu_custom_call.1} parent=1 // pred_check_branch
      %44 = sbr.rel (0) target = $region17
    $region16: #{tpu_custom_call.1} parent=1 // pred_region
      %45 = dma.done [#allocation3], 256
    $region17: #{tpu_custom_call.1} parent=1 // pred_fallthru
      _
    %46 = vsyncpa [#allocation3], 1

</llo_original>
